<compile_context>
chip_gen: v7x
topology: tpu7x:2x2x1
jax: 0.10.0
libtpu: 0.0.40
codegen_flags: <defaults>
</compile_context>

<pallas_src>
import jax
import jax.numpy as jnp
from jax.experimental import pallas as pl
from jax.experimental.pallas import tpu as pltpu


def _conv_kernel(w_ref, b_ref, x_ref, o_ref):
    # w_ref: (C_out, 3*C_in)   b_ref: (C_out, 1) f32
    # x_ref: (B_TILE, 3*C_in, T)   o_ref: (B_TILE, C_out, T)
    w = w_ref[...]                      # hoisted: loaded once per grid step
    bias = b_ref[...]                   # (C_out, 1) broadcasts over lanes
    for b in range(o_ref.shape[0]):     # static unroll over the batch tile
        acc = jnp.dot(w, x_ref[b], preferred_element_type=jnp.float32)
        o_ref[b] = (acc + bias).astype(o_ref.dtype)


# Conservative per-step budget (double-buffered blocks) that fits the scoped
# VMEM defaults of every generation (v5e 16MiB, v6e 32MiB, v7x 32MiB of 64MiB).
_VMEM_BUDGET = 12 * 1024 * 1024


def _choose_tiles(batch, c_in, c_out, l_out, itemsize):
    """Pick (B_TILE, L_TILE): lane-dense L tiles sized to the VMEM budget."""
    def step_bytes(bt, t):
        # 2x double-buffer x (stacked-tap input block + output block)
        return 2 * (bt * 3 * c_in * t + bt * c_out * t) * itemsize

    if l_out % 128 != 0 or step_bytes(1, l_out) <= _VMEM_BUDGET:
        l_tile = l_out                      # full extent is always a legal block
    else:
        l_tile = 128
        for cand in (2048, 1024, 512, 256):
            if l_out % cand == 0 and step_bytes(1, cand) <= _VMEM_BUDGET:
                l_tile = cand
                break

    # Batch-block only when the per-step block is small: amortizes the
    # ~0.35us per-grid-step overhead without blowing the VMEM budget.
    b_tile = 1
    small = min(_VMEM_BUDGET, 4 * 1024 * 1024)
    for cand in (8, 4, 2):
        if batch % cand == 0 and step_bytes(cand, l_tile) <= small:
            b_tile = cand
            break
    return b_tile, l_tile


@jax.jit
def downsample1d(x, w, bias):
    """Conv1d(dim, dim, kernel_size=3, stride=2, padding=1).

    x: (B, C_in, L); w: (C_out, C_in, 3); bias: (C_out,) -> (B, C_out, L_out).
    """
    B, C_in, L = x.shape
    C_out = w.shape[0]
    L_out = (L + 2 * 1 - 3) // 2 + 1

    # Conv zero-padding: 1 on the left, and enough on the right so that the
    # k=2 tap of the last output position (padded index 2*L_out) exists.
    pad_right = max(0, 2 * L_out - L)
    x_pad = jnp.pad(x, ((0, 0), (0, 0), (1, pad_right)))   # length 2*L_out + 1

    # Three stride-2 tap views, stacked along the channel axis so the kernel
    # does a single GEMM with contracted dim 3*C_in. Each slice is
    # (B, C_in, L_out) and the stacked block tiles exactly like the output
    # (lane-dense, no in-kernel strided loads).
    x0 = x_pad[:, :, 0:2 * L_out:2]        # taps at 2l     (k = 0)
    x1 = x_pad[:, :, 1:2 * L_out:2]        # taps at 2l + 1 (k = 1)
    x2 = x_pad[:, :, 2:2 * L_out + 1:2]    # taps at 2l + 2 (k = 2)
    x_taps = jnp.concatenate([x0, x1, x2], axis=1)          # (B, 3*C_in, L_out)

    # Flatten weights to match the tap stacking order: column k*C_in + c.
    w_flat = jnp.transpose(w, (0, 2, 1)).reshape(C_out, 3 * C_in).astype(x.dtype)
    bias2d = bias.reshape(C_out, 1).astype(jnp.float32)

    b_tile, l_tile = _choose_tiles(B, C_in, C_out, L_out, x.dtype.itemsize)
    grid = (B // b_tile, L_out // l_tile)

    return pl.pallas_call(
        _conv_kernel,
        out_shape=jax.ShapeDtypeStruct((B, C_out, L_out), x.dtype),
        grid_spec=pltpu.PrefetchScalarGridSpec(
            num_scalar_prefetch=0,
            grid=grid,
            in_specs=[
                pl.BlockSpec((C_out, 3 * C_in), lambda i, j: (0, 0)),  # weights (resident)
                pl.BlockSpec((C_out, 1), lambda i, j: (0, 0)),         # bias (resident)
                pl.BlockSpec((b_tile, 3 * C_in, l_tile), lambda i, j: (i, 0, j)),
            ],
            out_specs=pl.BlockSpec((b_tile, C_out, l_tile), lambda i, j: (i, 0, j)),
        ),
        compiler_params=pltpu.CompilerParams(
            dimension_semantics=("parallel", "parallel"),
            vmem_limit_bytes=32 * 1024 * 1024,
        ),
    )(w_flat, bias2d, x_taps)


def _reference(x, w, bias):
    out = jax.lax.conv_general_dilated(
        x, w, window_strides=(2,), padding=((1, 1),),
        dimension_numbers=("NCH", "OIH", "NCH"))
    return out + bias[None, :, None]


if __name__ == "__main__":
    key = jax.random.PRNGKey(0)
    kx, kw, kb = jax.random.split(key, 3)
    B, C, L = 2, 4, 16   # batch=2, dim=4, seq=16

    # Dyadic (bf16-exact) test values so the numerical check is independent of
    # the MXU's default f32 matmul precision.
    x = jnp.round(jax.random.normal(kx, (B, C, L), dtype=jnp.float32) * 4.0) / 4.0
    w = jnp.round(jax.random.normal(kw, (C, C, 3), dtype=jnp.float32) * 4.0) / 8.0
    bias = jnp.round(jax.random.normal(kb, (C,), dtype=jnp.float32) * 4.0) / 8.0

    out = downsample1d(x, w, bias)
    out = jax.block_until_ready(out)

    ref = _reference(x, w, bias)
    L_out = (L + 2 - 3) // 2 + 1
    assert out.shape == (B, C, L_out), out.shape
    assert jnp.allclose(out, ref, atol=1e-5, rtol=1e-5), "mismatch vs reference conv"

    print("KERNEL_OK")
</pallas_src>

<mosaic_0001>
module attributes {stable_mosaic.version = 11 : i64} {
  func.func @_conv_kernel(%arg0: i32, %arg1: i32, %arg2: memref<4x12xf32, #tpu.memory_space<vmem>>, %arg3: memref<4x1xf32, #tpu.memory_space<vmem>>, %arg4: memref<2x12x8xf32, #tpu.memory_space<vmem>>, %arg5: memref<2x4x8xf32, #tpu.memory_space<vmem>>) attributes {dimension_semantics = [#tpu.dimension_semantics<parallel>, #tpu.dimension_semantics<parallel>], iteration_bounds = array<i64: 1, 1>, scalar_prefetch = 0 : i64, scratch_operands = 0 : i64, tpu.core_type = #tpu.core_type<tc>, window_params = [{pipeline_mode = #tpu.pipeline_mode<synchronous>, transform_indices = @transform_0, window_bounds = array<i64: 4, 12>}, {pipeline_mode = #tpu.pipeline_mode<synchronous>, transform_indices = @transform_1, window_bounds = array<i64: 4, 1>}, {transform_indices = @transform_2, window_bounds = array<i64: 2, 12, 8>}, {transform_indices = @transform_3, window_bounds = array<i64: 2, 4, 8>}]} {
    %c0 = arith.constant 0 : index
    %c0_0 = arith.constant 0 : index
    %0 = vector.load %arg2[%c0, %c0_0] : memref<4x12xf32, #tpu.memory_space<vmem>>, vector<4x12xf32>
    %c0_1 = arith.constant 0 : index
    %c0_2 = arith.constant 0 : index
    %1 = vector.load %arg3[%c0_1, %c0_2] : memref<4x1xf32, #tpu.memory_space<vmem>>, vector<4x1xf32>
    %c0_3 = arith.constant 0 : index
    %c0_4 = arith.constant 0 : index
    %c0_5 = arith.constant 0 : index
    %2 = vector.load %arg4[%c0_3, %c0_4, %c0_5] : memref<2x12x8xf32, #tpu.memory_space<vmem>>, vector<1x12x8xf32>
    %3 = vector.shape_cast %2 : vector<1x12x8xf32> to vector<12x8xf32>
    %cst = arith.constant dense<0.000000e+00> : vector<4x8xf32>
    %4 = tpu.matmul %0, %3, %cst {dimension_numbers = #tpu.dot_dimension_numbers<[1], [0], [0], [1], [0, 0, 1, 1], [], []>} : vector<4x12xf32>, vector<12x8xf32>, vector<4x8xf32> -> vector<4x8xf32>
    %5 = vector.broadcast %1 : vector<4x1xf32> to vector<4x8xf32>
    %6 = arith.addf %4, %5 : vector<4x8xf32>
    %c0_6 = arith.constant 0 : index
    %c0_7 = arith.constant 0 : index
    %c0_8 = arith.constant 0 : index
    %7 = vector.load %arg5[%c0_6, %c0_7, %c0_8] : memref<2x4x8xf32, #tpu.memory_space<vmem>>, vector<1x4x8xf32>
    %8 = vector.shape_cast %7 : vector<1x4x8xf32> to vector<4x8xf32>
    %9 = vector.shape_cast %6 : vector<4x8xf32> to vector<1x4x8xf32>
    tpu.vector_store %arg5[%c0_6, %c0_7, %c0_8], %9 {strides = array<i32>} : memref<2x4x8xf32, #tpu.memory_space<vmem>>, vector<1x4x8xf32>,
    %c1 = arith.constant 1 : index
    %c0_9 = arith.constant 0 : index
    %c0_10 = arith.constant 0 : index
    %10 = vector.load %arg4[%c1, %c0_9, %c0_10] : memref<2x12x8xf32, #tpu.memory_space<vmem>>, vector<1x12x8xf32>
    %11 = vector.shape_cast %10 : vector<1x12x8xf32> to vector<12x8xf32>
    %cst_11 = arith.constant dense<0.000000e+00> : vector<4x8xf32>
    %12 = tpu.matmul %0, %11, %cst_11 {dimension_numbers = #tpu.dot_dimension_numbers<[1], [0], [0], [1], [0, 0, 1, 1], [], []>} : vector<4x12xf32>, vector<12x8xf32>, vector<4x8xf32> -> vector<4x8xf32>
    %13 = vector.broadcast %1 : vector<4x1xf32> to vector<4x8xf32>
    %14 = arith.addf %12, %13 : vector<4x8xf32>
    %c1_12 = arith.constant 1 : index
    %c0_13 = arith.constant 0 : index
    %c0_14 = arith.constant 0 : index
    %15 = vector.load %arg5[%c1_12, %c0_13, %c0_14] : memref<2x4x8xf32, #tpu.memory_space<vmem>>, vector<1x4x8xf32>
    %16 = vector.shape_cast %15 : vector<1x4x8xf32> to vector<4x8xf32>
    %17 = vector.shape_cast %14 : vector<4x8xf32> to vector<1x4x8xf32>
    tpu.vector_store %arg5[%c1_12, %c0_13, %c0_14], %17 {strides = array<i32>} : memref<2x4x8xf32, #tpu.memory_space<vmem>>, vector<1x4x8xf32>,
    return
  }
  func.func @transform_0(%arg0: i32, %arg1: i32) -> (i32, i32) {
    %c0_i32 = arith.constant 0 : i32
    %c0_i32_0 = arith.constant 0 : i32
    %c0_i32_1 = arith.constant 0 : i32
    return %c0_i32, %c0_i32_0 : i32, i32
  }
  func.func @transform_1(%arg0: i32, %arg1: i32) -> (i32, i32) {
    %c0_i32 = arith.constant 0 : i32
    %c0_i32_0 = arith.constant 0 : i32
    %c0_i32_1 = arith.constant 0 : i32
    return %c0_i32, %c0_i32_0 : i32, i32
  }
  func.func @transform_2(%arg0: i32, %arg1: i32) -> (i32, i32, i32) {
    %c0_i32 = arith.constant 0 : i32
    %c0_i32_0 = arith.constant 0 : i32
    return %arg0, %c0_i32, %arg1 : i32, i32, i32
  }
  func.func @transform_3(%arg0: i32, %arg1: i32) -> (i32, i32, i32) {
    %c0_i32 = arith.constant 0 : i32
    %c0_i32_0 = arith.constant 0 : i32
    return %arg0, %c0_i32, %arg1 : i32, i32, i32
  }
}

</mosaic_0001>

<llo_original>
// kernel: downsample1d.1
$region0: #{downsample1d.1}
  #allocation0 [shape = 'u32[]', space=smem, size = 0x4, offset = 0x4, fixed_abs, tag = 'smem constant byte address 0x4 - core index']
  #allocation1 [shape = 'u32[144,128]{1,0:T(1,128)}', space=vmem, size = 0x12000, scoped, tag = 'internal scratch']
  %s0 = inlined_call_operand.vmem [shape: f32[4,12], index: 0, kind: input, shape index: {}]
  %s1 = inlined_call_operand.vmem [shape: f32[4,1], index: 1, kind: input, shape index: {}]
  %s2 = inlined_call_operand.vmem [shape: f32[2,12,8], index: 2, kind: input, shape index: {}]
  %s3 = inlined_call_operand.hbm [shape: f32[2,4,8], index: 3, kind: output, shape index: {}]
  %s4 = sld [smem:[#allocation0]]
  $region22: #{downsample1d.1} parent=0
    _
  %s6 = ssub.s32 1, %s4
  %s7 = scalar_select 0, %s6, %s4
  $region1: #{downsample1d.1} parent=0
    #allocation2 [shape = 'u8[4096]{0}', space=vmem, size = 0x1000, scoped, tag = 'output window, operand 0, single buffered']
    #allocation3 [shape = 's32[1]{0}', space=sflag, size = 0x4, scoped, tag = 'scoped memory for downsample1d.1']
    %8 = vsyncpa [#allocation3], 0
    // Predicated region
    $region2: #{downsample1d.1} parent=1 // pred_check
      _
    $region3: #{downsample1d.1} parent=1 // pred_check_branch
      %10 = sbr.rel (0) target = $region5
    $region4: #{downsample1d.1} parent=1 // pred_region
      _
    $region5: #{downsample1d.1} parent=1 // pred_fallthru
      _
    // Predicated region
    $region6: #{downsample1d.1} parent=1 // pred_check
      _
    $region7: #{downsample1d.1} parent=1 // pred_check_branch
      %12 = sbr.rel (0) target = $region9
    $region8: #{downsample1d.1} parent=1 // pred_region
      _
    $region9: #{downsample1d.1} parent=1 // pred_fallthru
      _
    // Predicated region
    $region10: #{downsample1d.1} parent=1 // pred_check
      _
    $region11: #{downsample1d.1} parent=1 // pred_check_branch
      %14 = sbr.rel (0) target = $region13
    $region12: #{downsample1d.1} parent=1 // pred_region
      _
    $region13: #{downsample1d.1} parent=1 // pred_fallthru
      _
    %v15 = vld [vmem:[%s0] sm:$0xf]
    %v16 = vld [vmem:[%s1] sm:$0xf]
    %v17 = vld [vmem:[%s2] sm:$0xff]
    %v18 = vld [vmem:[%s2 + $0x8] sm:$0xf]
    %20 = vset.pattern.permute.xlu0 0
    %21 = vperm.xlu0 %20, %v16
    %v22 = vpop.permute.xlu0 %21
    %vm24 = vcmask 97280
    %v26 = vsel %vm24, %v15, 0
    %vm28 = vcmask 1043456
    %v30 = vsel %vm28, %v18, 0
    %32 = vmatprep.subr.mxu0 0.0
    %33 = vmatpush1.msra.mxu0 %v17
    %34 = vmatprep.subr.mxu0 0.0
    %35 = vmatpush1.msra.mxu0 %v30
    %36 = vmatprep.subr.mxu0 0.0
    %37 = vmatpush1.msra.mxu0 0.0
    %38 = vmatprep.subr.mxu0 0.0
    %39 = vmatpush1.msra.mxu0 0.0
    %40 = vmatprep.subr.mxu0 0.0
    %41 = vmatpush1.msra.mxu0 0.0
    %42 = vmatprep.subr.mxu0 0.0
    %43 = vmatpush1.msra.mxu0 0.0
    %44 = vmatprep.subr.mxu0 0.0
    %45 = vmatpush1.msra.mxu0 0.0
    %46 = vmatprep.subr.mxu0 0.0
    %47 = vmatpush1.msra.mxu0 0.0
    %48 = vmatprep.subr.mxu0 0.0
    %49 = vmatpush1.msra.mxu0 0.0
    %50 = vmatprep.subr.mxu0 0.0
    %51 = vmatpush1.msra.mxu0 0.0
    %52 = vmatprep.subr.mxu0 0.0
    %53 = vmatpush1.msra.mxu0 0.0
    %54 = vmatprep.subr.mxu0 0.0
    %55 = vmatpush1.msra.mxu0 0.0
    %56 = vmatprep.subr.mxu0 0.0
    %57 = vmatpush1.msra.mxu0 0.0
    %58 = vmatprep.subr.mxu0 0.0
    %59 = vmatpush1.msra.mxu0 0.0
    %60 = vmatprep.subr.mxu0 0.0
    %61 = vmatpush1.msra.mxu0 0.0
    %62 = vmatprep.subr.mxu0 0.0
    %63 = vmatpush1.msra.mxu0 0.0
    %64 = vmatprep.subr.mxu0 0.0
    %65 = vmatpush1.msra.mxu0 0.0
    %66 = vmatprep.subr.mxu0 0.0
    %67 = vmatpush1.msra.mxu0 0.0
    %68 = vmatprep.subr.mxu0 0.0
    %69 = vmatpush1.msra.mxu0 0.0
    %70 = vmatprep.subr.mxu0 0.0
    %71 = vmatpush1.msra.mxu0 0.0
    %72 = vmatprep.subr.mxu0 0.0
    %73 = vmatpush1.msra.mxu0 0.0
    %74 = vmatprep.subr.mxu0 0.0
    %75 = vmatpush1.msra.mxu0 0.0
    %76 = vmatprep.subr.mxu0 0.0
    %77 = vmatpush1.msra.mxu0 0.0
    %78 = vmatprep.subr.mxu0 0.0
    %79 = vmatpush1.msra.mxu0 0.0
    %80 = vmatprep.subr.mxu0 0.0
    %81 = vmatpush1.msra.mxu0 0.0
    %82 = vmatprep.subr.mxu0 0.0
    %83 = vmatpush1.msra.mxu0 0.0
    %84 = vmatprep.subr.mxu0 0.0
    %85 = vmatpush1.msra.mxu0 0.0
    %86 = vmatprep.subr.mxu0 0.0
    %87 = vmatpush1.msra.mxu0 0.0
    %88 = vmatprep.subr.mxu0 0.0
    %89 = vmatpush1.msra.mxu0 0.0
    %90 = vmatprep.subr.mxu0 0.0
    %91 = vmatpush1.msra.mxu0 0.0
    %92 = vmatprep.subr.mxu0 0.0
    %93 = vmatpush1.msra.mxu0 0.0
    %94 = vmatprep.subr.mxu0 0.0
    %95 = vmatpush1.msra.mxu0 0.0
    %96 = vmatprep.mubr.f32.mxu0 0.0
    %97 = vmatmul.mubr.f32.gmra.mrb[0].mxu0 %v26
    %v98 = vpop.f32.mrb[0].mxu0
    %v99 = vadd.f32 %v22, %v98
    %v100 = vpop.f32.mrb[0].mxu0
    %101 = vdwg.mxu0
    %vm102 = vcmask 60416
    %103 = vst.msk [vmem:[#allocation2] sm:$0xf] %vm102, %v99
    %s104 = scalar_lea.vmem %s2, 16
    %v105 = vld [vmem:[%s104] sm:$0xff]
    %v106 = vld [vmem:[%s104 + $0x8] sm:$0xf]
    %v108 = vsel %vm28, %v106, 0
    %110 = vmatprep.subr.mxu0 0.0
    %111 = vmatpush1.msra.mxu0 %v105
    %112 = vmatprep.subr.mxu0 0.0
    %113 = vmatpush1.msra.mxu0 %v108
    %114 = vmatprep.subr.mxu0 0.0
    %115 = vmatpush1.msra.mxu0 0.0
    %116 = vmatprep.subr.mxu0 0.0
    %117 = vmatpush1.msra.mxu0 0.0
    %118 = vmatprep.subr.mxu0 0.0
    %119 = vmatpush1.msra.mxu0 0.0
    %120 = vmatprep.subr.mxu0 0.0
    %121 = vmatpush1.msra.mxu0 0.0
    %122 = vmatprep.subr.mxu0 0.0
    %123 = vmatpush1.msra.mxu0 0.0
    %124 = vmatprep.subr.mxu0 0.0
    %125 = vmatpush1.msra.mxu0 0.0
    %126 = vmatprep.subr.mxu0 0.0
    %127 = vmatpush1.msra.mxu0 0.0
    %128 = vmatprep.subr.mxu0 0.0
    %129 = vmatpush1.msra.mxu0 0.0
    %130 = vmatprep.subr.mxu0 0.0
    %131 = vmatpush1.msra.mxu0 0.0
    %132 = vmatprep.subr.mxu0 0.0
    %133 = vmatpush1.msra.mxu0 0.0
    %134 = vmatprep.subr.mxu0 0.0
    %135 = vmatpush1.msra.mxu0 0.0
    %136 = vmatprep.subr.mxu0 0.0
    %137 = vmatpush1.msra.mxu0 0.0
    %138 = vmatprep.subr.mxu0 0.0
    %139 = vmatpush1.msra.mxu0 0.0
    %140 = vmatprep.subr.mxu0 0.0
    %141 = vmatpush1.msra.mxu0 0.0
    %142 = vmatprep.subr.mxu0 0.0
    %143 = vmatpush1.msra.mxu0 0.0
    %144 = vmatprep.subr.mxu0 0.0
    %145 = vmatpush1.msra.mxu0 0.0
    %146 = vmatprep.subr.mxu0 0.0
    %147 = vmatpush1.msra.mxu0 0.0
    %148 = vmatprep.subr.mxu0 0.0
    %149 = vmatpush1.msra.mxu0 0.0
    %150 = vmatprep.subr.mxu0 0.0
    %151 = vmatpush1.msra.mxu0 0.0
    %152 = vmatprep.subr.mxu0 0.0
    %153 = vmatpush1.msra.mxu0 0.0
    %154 = vmatprep.subr.mxu0 0.0
    %155 = vmatpush1.msra.mxu0 0.0
    %156 = vmatprep.subr.mxu0 0.0
    %157 = vmatpush1.msra.mxu0 0.0
    %158 = vmatprep.subr.mxu0 0.0
    %159 = vmatpush1.msra.mxu0 0.0
    %160 = vmatprep.subr.mxu0 0.0
    %161 = vmatpush1.msra.mxu0 0.0
    %162 = vmatprep.subr.mxu0 0.0
    %163 = vmatpush1.msra.mxu0 0.0
    %164 = vmatprep.subr.mxu0 0.0
    %165 = vmatpush1.msra.mxu0 0.0
    %166 = vmatprep.subr.mxu0 0.0
    %167 = vmatpush1.msra.mxu0 0.0
    %168 = vmatprep.subr.mxu0 0.0
    %169 = vmatpush1.msra.mxu0 0.0
    %170 = vmatprep.subr.mxu0 0.0
    %171 = vmatpush1.msra.mxu0 0.0
    %172 = vmatprep.subr.mxu0 0.0
    %173 = vmatpush1.msra.mxu0 0.0
    %174 = vmatprep.mubr.f32.mxu0 0.0
    %175 = vmatmul.mubr.f32.gmra.mrb[0].mxu0 %v26
    %v176 = vpop.f32.mrb[0].mxu0
    %v177 = vadd.f32 %v22, %v176
    %v178 = vpop.f32.mrb[0].mxu0
    %179 = vdwg.mxu0
    %s180 = scalar_lea.vmem [#allocation2], 4
    %181 = vst.msk [vmem:[%s180] sm:$0xf] %vm102, %v177
    // Predicated region
    $region14: #{downsample1d.1} parent=1 // pred_check
      _
    $region15: #{downsample1d.1} parent=1 // pred_check_branch
      %183 = sbr.rel (0) target = $region17
    $region16: #{downsample1d.1} parent=1 // pred_region
      %s185 = ssub.s32 128, 128
      %186 = vsyncadd [#allocation3], %s185
      %s187 = sshll.u32 [#allocation2], 4
      %s188 = int_to_ptr.vmem [resolvable:$true] %s187
      %193 = dma.vmem_to_hbm [thread:$0]  %s188, 128, %s3, [#allocation3], 64, 64, 4
    $region17: #{downsample1d.1} parent=1 // pred_fallthru
      _
    // Predicated region
    $region18: #{downsample1d.1} parent=1 // pred_check
      _
    $region19: #{downsample1d.1} parent=1 // pred_check_branch
      %195 = sbr.rel (0) target = $region21
    $region20: #{downsample1d.1} parent=1 // pred_region
      %196 = dma.done [#allocation3], 128
    $region21: #{downsample1d.1} parent=1 // pred_fallthru
      _
    %197 = vsyncpa [#allocation3], 1

</llo_original>
